<compile_context>
chip_gen: v5e
topology: v5e:2x2
jax: 0.10.0
libtpu: 0.0.40
codegen_flags: <defaults>
</compile_context>

<pallas_src>
import functools

import jax
import jax.numpy as jnp
from jax.experimental import pallas as pl
from jax.experimental.pallas import tpu as pltpu


def _latch_kernel(s_ref, v_ref, q_ref, out_ref, *, sum_threshold):
    # Hardtanh(0, 1) in the native dtype; accumulate the row reduction in f32
    # (avoids materializing a full f32 copy of the s block for bf16 inputs).
    clamped = jnp.clip(s_ref[...], 0.0, 1.0)
    row_sum = jnp.sum(clamped, axis=-1, dtype=jnp.float32, keepdims=True)
    consent = row_sum >= sum_threshold            # (TB, 1): mean(-1) >= 0.75
    # Single VPU select instead of v*t + q*(1-t).
    out_ref[...] = jnp.where(consent, v_ref[...], q_ref[...])


def _sublane_multiple(*dtypes):
    """Sublane row multiple for the narrowest dtype (8 f32 / 16 bf16 / 32 int8)."""
    m = 8
    for dt in dtypes:
        m = max(m, 32 // max(jnp.dtype(dt).itemsize, 1))
    return m


def _default_block_rows(batch, hidden_padded, itemsize, sublane,
                        target_bytes=4 << 20, min_grid=4):
    """Rows/block: ~target_bytes per array per block, sublane-aligned, and
    capped so the batch grid has >= min_grid blocks (v7x megacore sharding)."""
    if batch <= sublane:
        return batch                               # full-batch block is legal
    rows = max(sublane, target_bytes // max(hidden_padded * itemsize, 1))
    # Keep several blocks so the "parallel" grid axis can use both v7x TCs.
    rows = min(rows, max(sublane, pl.cdiv(batch, min_grid)))
    rows -= rows % sublane
    rows = max(rows, sublane)
    return min(rows, batch)


def latch_forward(s, v, q, block_rows=None):
    """One Latch.forward step.

    Args:
      s: (B, D) consent signal.
      v: (B, D) new value.
      q: (B, D) current latch state (q_train or q_valid); output is aliased
         onto this buffer — do not reuse the pre-step q after the call.
    Returns:
      new_q: (B, D) — also the new latch state.
    """
    assert s.shape == v.shape == q.shape and s.ndim == 2
    B, D = s.shape

    # mean(-1) >= 0.75  <=>  sum(-1) >= 0.75*D (exact when D % 4 == 0).
    # Zero-padding the hidden dim below leaves the sum unchanged, so the
    # threshold always uses the ORIGINAL D.
    sum_threshold = 0.75 * float(D)

    # Lane-dense output: pad the hidden dim to a multiple of 128 if needed.
    pad = (-D) % 128
    if pad:
        padcfg = ((0, 0), (0, pad))
        s = jnp.pad(s, padcfg)
        v = jnp.pad(v, padcfg)
        q = jnp.pad(q, padcfg)
    Dp = D + pad

    itemsizes = [jnp.dtype(a.dtype).itemsize for a in (s, v, q)]
    sublane = _sublane_multiple(s.dtype, v.dtype, q.dtype)
    tb = block_rows if block_rows is not None else _default_block_rows(
        B, Dp, max(itemsizes), sublane)

    # Right-size VMEM: (3 inputs + 1 output) x 2 pipeline buffers x block bytes
    # + headroom; stays well under v7x's 64 MiB physical VMEM.
    block_bytes = tb * Dp * (sum(itemsizes) + itemsizes[1])   # + output (v dtype)
    vmem_limit = int(min(max(2 * block_bytes + (8 << 20), 16 << 20), 48 << 20))

    spec = pl.BlockSpec((tb, Dp), lambda i: (i, 0))
    out = pl.pallas_call(
        functools.partial(_latch_kernel, sum_threshold=sum_threshold),
        out_shape=jax.ShapeDtypeStruct((B, Dp), v.dtype),
        grid=(pl.cdiv(B, tb),),
        in_specs=[spec, spec, spec],
        out_specs=spec,
        # new_q replaces q: reuse q's HBM buffer for the output.
        input_output_aliases={2: 0},
        compiler_params=pltpu.CompilerParams(
            dimension_semantics=("parallel",),     # shard batch across TCs (v7x)
            vmem_limit_bytes=vmem_limit,
        ),
    )(s, v, q)
    return out[:, :D] if pad else out


# Donate the carried latch state so the output aliasing actually avoids a copy.
@functools.partial(jax.jit, static_argnames=("block_rows",), donate_argnums=(2,))
def latch_step(s, v, q, block_rows=None):
    return latch_forward(s, v, q, block_rows)


def latch_reference(s, v, q):
    clamped = jnp.clip(s.astype(jnp.float32), 0.0, 1.0)
    t = (jnp.mean(clamped, axis=-1, keepdims=True) >= 0.75).astype(jnp.float32)
    return (v * t + q * (1.0 - t)).astype(v.dtype)


if __name__ == "__main__":
    # --- Case 1: D multiple of 128; default byte-sized tiling -> 4-block grid.
    B, D = 64, 256
    key = jax.random.PRNGKey(0)
    ks, kv = jax.random.split(key)

    # Some rows clearly above / below the 0.75 consent threshold.
    s = jax.random.uniform(ks, (B, D), jnp.float32, minval=-0.5, maxval=1.5)
    v = jax.random.normal(kv, (B, D), jnp.float32)

    # Latch init: q_train = zeros(size) (per module __init__).
    q_state = jnp.zeros((B, D), dtype=jnp.float32)

    # Step 1 (q_state is donated into the call; not reused afterwards).
    new_q = jax.block_until_ready(latch_step(s, v, q_state))
    ref1 = latch_reference(s, v, jnp.zeros((B, D), jnp.float32))
    assert jnp.allclose(new_q, ref1, atol=1e-6), "case 1 step 1 mismatch"

    # Step 2: carry state forward (equivalent of self.q_train = new_q).
    new_q2 = jax.block_until_ready(latch_step(-s, v * 2.0, new_q))
    ref2 = latch_reference(-s, v * 2.0, ref1)
    assert jnp.allclose(new_q2, ref2, atol=1e-6), "case 1 step 2 mismatch"

    # --- Case 2: D not a multiple of 128 (exercises the lane-dense pad path).
    B2, D2 = 40, 200
    ks2, kv2 = jax.random.split(jax.random.PRNGKey(1))
    s2 = jax.random.uniform(ks2, (B2, D2), jnp.float32, minval=-0.5, maxval=1.5)
    v2 = jax.random.normal(kv2, (B2, D2), jnp.float32)
    q2 = jnp.zeros((B2, D2), dtype=jnp.float32)

    out2 = jax.block_until_ready(latch_step(s2, v2, q2))
    ref3 = latch_reference(s2, v2, jnp.zeros((B2, D2), jnp.float32))
    assert jnp.allclose(out2, ref3, atol=1e-6), "case 2 mismatch"

    print("KERNEL_OK")
</pallas_src>

<mosaic_0001>
module attributes {stable_mosaic.version = 11 : i64} {
  func.func @_latch_kernel(%arg0: i32, %arg1: memref<16x256xf32, #tpu.memory_space<vmem>>, %arg2: memref<16x256xf32, #tpu.memory_space<vmem>>, %arg3: memref<16x256xf32, #tpu.memory_space<vmem>>, %arg4: memref<16x256xf32, #tpu.memory_space<vmem>>) attributes {dimension_semantics = [#tpu.dimension_semantics<parallel>], iteration_bounds = array<i64: 4>, scalar_prefetch = 0 : i64, scratch_operands = 0 : i64, tpu.core_type = #tpu.core_type<tc>, window_params = [{transform_indices = @transform_0, window_bounds = array<i64: 16, 256>}, {transform_indices = @transform_1, window_bounds = array<i64: 16, 256>}, {transform_indices = @transform_2, window_bounds = array<i64: 16, 256>}, {transform_indices = @transform_3, window_bounds = array<i64: 16, 256>}]} {
    %c0 = arith.constant 0 : index
    %c0_0 = arith.constant 0 : index
    %0 = vector.load %arg1[%c0, %c0_0] : memref<16x256xf32, #tpu.memory_space<vmem>>, vector<16x256xf32>
    %cst = arith.constant 0.000000e+00 : f32
    %cst_1 = arith.constant 1.000000e+00 : f32
    %1 = vector.broadcast %cst : f32 to vector<16x256xf32>
    %2 = arith.maximumf %1, %0 : vector<16x256xf32>
    %3 = vector.broadcast %cst_1 : f32 to vector<16x256xf32>
    %4 = arith.minimumf %3, %2 : vector<16x256xf32>
    %cst_2 = arith.constant dense<0.000000e+00> : vector<16xf32>
    %5 = vector.multi_reduction <add>, %4, %cst_2 [1] : vector<16x256xf32> to vector<16xf32>
    %6 = vector.shape_cast %5 : vector<16xf32> to vector<16x1xf32>
    %cst_3 = arith.constant 1.920000e+02 : f32
    %7 = vector.broadcast %cst_3 : f32 to vector<16x1xf32>
    %8 = arith.cmpf oge, %6, %7 : vector<16x1xf32>
    %c0_4 = arith.constant 0 : index
    %c0_5 = arith.constant 0 : index
    %9 = vector.load %arg2[%c0_4, %c0_5] : memref<16x256xf32, #tpu.memory_space<vmem>>, vector<16x256xf32>
    %c0_6 = arith.constant 0 : index
    %c0_7 = arith.constant 0 : index
    %10 = vector.load %arg3[%c0_6, %c0_7] : memref<16x256xf32, #tpu.memory_space<vmem>>, vector<16x256xf32>
    %11 = vector.shape_cast %8 : vector<16x1xi1> to vector<16x1xi1>
    %12 = vector.broadcast %11 : vector<16x1xi1> to vector<16x256xi1>
    %13 = arith.select %12, %9, %10 : vector<16x256xi1>, vector<16x256xf32>
    %c0_8 = arith.constant 0 : index
    %c0_9 = arith.constant 0 : index
    %14 = vector.load %arg4[%c0_8, %c0_9] : memref<16x256xf32, #tpu.memory_space<vmem>>, vector<16x256xf32>
    tpu.vector_store %arg4[%c0_8, %c0_9], %13 {strides = array<i32>} : memref<16x256xf32, #tpu.memory_space<vmem>>, vector<16x256xf32>,
    return
  }
  func.func @transform_0(%arg0: i32) -> (i32, i32) {
    %c0_i32 = arith.constant 0 : i32
    %c0_i32_0 = arith.constant 0 : i32
    return %arg0, %c0_i32 : i32, i32
  }
  func.func @transform_1(%arg0: i32) -> (i32, i32) {
    %c0_i32 = arith.constant 0 : i32
    %c0_i32_0 = arith.constant 0 : i32
    return %arg0, %c0_i32 : i32, i32
  }
  func.func @transform_2(%arg0: i32) -> (i32, i32) {
    %c0_i32 = arith.constant 0 : i32
    %c0_i32_0 = arith.constant 0 : i32
    return %arg0, %c0_i32 : i32, i32
  }
  func.func @transform_3(%arg0: i32) -> (i32, i32) {
    %c0_i32 = arith.constant 0 : i32
    %c0_i32_0 = arith.constant 0 : i32
    return %arg0, %c0_i32 : i32, i32
  }
}

</mosaic_0001>

<llo_original>
// kernel: latch_step.1
$region0: #{latch_step.1}
  #allocation0 [shape = 'u32[]', space=smem, size = 0x4, offset = 0x4, fixed_abs, tag = 'smem constant byte address 0x4 - core index']
  #allocation1 [shape = 'u32[72,128]{1,0:T(1,128)}', space=vmem, size = 0x9000, scoped, tag = 'internal scratch']
  %s0 = inlined_call_operand.hbm [shape: f32[64,256], index: 0, kind: input, shape index: {}]
  %s1 = inlined_call_operand.hbm [shape: f32[64,256], index: 1, kind: input, shape index: {}]
  %s2 = inlined_call_operand.hbm [shape: f32[64,256], index: 2, kind: input, shape index: {}, may-alias: {2,3}]
  %s3 = inlined_call_operand.hbm [shape: f32[64,256], index: 3, kind: output, shape index: {}, may-alias: {2,3}]
  %s4 = sld [smem:[#allocation0]]
  $region57: #{latch_step.1} parent=0
    _
  %s6 = ssub.s32 1, %s4
  %s7 = scalar_select 0, %s6, %s4
  $region1: #{latch_step.1} parent=0
    #allocation2 [shape = 'u8[32768]{0}', space=vmem, size = 0x8000, scoped, tag = 'input window, operand 0']
    #allocation3 [shape = 's32[2]{0}', space=sflag, size = 0x8, scoped, tag = 'scoped memory for latch_step.1']
    #allocation4 [shape = 's32[2]{0}', space=sflag, size = 0x8, scoped, tag = 'scoped memory for latch_step.1']
    #allocation5 [shape = 'u8[32768]{0}', space=vmem, size = 0x8000, scoped, tag = 'input window, operand 1']
    #allocation6 [shape = 's32[2]{0}', space=sflag, size = 0x8, scoped, tag = 'scoped memory for latch_step.1']
    #allocation7 [shape = 'u8[32768]{0}', space=vmem, size = 0x8000, scoped, tag = 'input window, operand 2']
    #allocation8 [shape = 'u8[32768]{0}', space=vmem, size = 0x8000, scoped, tag = 'output window, operand 0']
    %8 = vsyncpa [#allocation3], 0
    %s9 = scalar_lea.sflag [#allocation3], 1
    %10 = vsyncpa %s9, 0
    %11 = vsyncpa [#allocation6], 0
    %s12 = scalar_lea.sflag [#allocation6], 1
    %13 = vsyncpa %s12, 0
    %14 = vsyncpa [#allocation4], 0
    %s15 = scalar_lea.sflag [#allocation4], 1
    %16 = vsyncpa %s15, 0
    loop: start=0, step=1, limit=6
    $region2: #{latch_step.1} parent=1 // loop_pre_header
      _
    $region3: #{latch_step.1} parent=1 // loop_header
      %s18 = sphi 0, %s22
      %p19 = scmp.ge.s32.totalorder %s18, 6
      %s28 = sphi 0, %s30
      %s31 = sphi 0, %s28
      %s32 = sphi 0, %s31
      %s48 = sphi 0, %s32
      %s54 = sphi 0, %s56
      %s57 = sphi 0, %s54
      %s58 = sphi 0, %s57
      %s74 = sphi 0, %s58
      %s80 = sphi 0, %s82
      %s83 = sphi 0, %s80
      %s84 = sphi 0, %s83
      %s100 = sphi 0, %s84
      %s106 = sphi 0, %s108
      %s109 = sphi 0, %s106
      %s110 = sphi 0, %s109
      %s126 = sphi 0, %s110
    $region4: #{latch_step.1} parent=1 // loop_header_branch
      %21 = sbr.rel (%p19) target = $region8
    $region5: #{latch_step.1} parent=1 // loop_body
      %s23 = ssub.s32 %s18, 1
      %s24 = ssub.s32 %s18, 2
      %s25 = sadd.s32 %s18, 1
      %s26 = ssub.s32 %s18, %s25
      %p27 = scmp.eq.s32.totalorder %s26, 0
      %s29 = sadd.s32 %s28, 1
      %s30 = scalar_select %p27, %s28, %s29
      %p33 = pneg %p27
      %p34 = scmp.eq.s32.totalorder %s18, 3
      %p35 = por %p33, %p34
      %p36 = scmp.ne.s32.totalorder %s28, %s31
      %p37 = scmp.eq.s32.totalorder %s18, 0
      %p38 = por %p36, %p37
      %p39 = scmp.ne.s32.totalorder %s28, %s31
      %p40 = scmp.eq.s32.totalorder %s23, 3
      %p41 = por %p39, %p40
      %p42 = scmp.ne.s32.totalorder %s31, %s32
      %p43 = scmp.eq.s32.totalorder %s23, 0
      %p44 = por %p42, %p43
      %p45 = scmp.ne.s32.totalorder %s31, %s32
      %p46 = scmp.eq.s32.totalorder %s24, 3
      %p47 = por %p45, %p46
      %p49 = scmp.ne.s32.totalorder %s32, %s48
      %p50 = scmp.eq.s32.totalorder %s24, 0
      %p51 = por %p49, %p50
      %s52 = ssub.s32 %s18, %s25
      %p53 = scmp.eq.s32.totalorder %s52, 0
      %s55 = sadd.s32 %s54, 1
      %s56 = scalar_select %p53, %s54, %s55
      %p59 = pneg %p53
      %p60 = scmp.eq.s32.totalorder %s18, 3
      %p61 = por %p59, %p60
      %p62 = scmp.ne.s32.totalorder %s54, %s57
      %p63 = scmp.eq.s32.totalorder %s18, 0
      %p64 = por %p62, %p63
      %p65 = scmp.ne.s32.totalorder %s54, %s57
      %p66 = scmp.eq.s32.totalorder %s23, 3
      %p67 = por %p65, %p66
      %p68 = scmp.ne.s32.totalorder %s57, %s58
      %p69 = scmp.eq.s32.totalorder %s23, 0
      %p70 = por %p68, %p69
      %p71 = scmp.ne.s32.totalorder %s57, %s58
      %p72 = scmp.eq.s32.totalorder %s24, 3
      %p73 = por %p71, %p72
      %p75 = scmp.ne.s32.totalorder %s58, %s74
      %p76 = scmp.eq.s32.totalorder %s24, 0
      %p77 = por %p75, %p76
      %s78 = ssub.s32 %s18, %s25
      %p79 = scmp.eq.s32.totalorder %s78, 0
      %s81 = sadd.s32 %s80, 1
      %s82 = scalar_select %p79, %s80, %s81
      %p85 = pneg %p79
      %p86 = scmp.eq.s32.totalorder %s18, 3
      %p87 = por %p85, %p86
      %p88 = scmp.ne.s32.totalorder %s80, %s83
      %p89 = scmp.eq.s32.totalorder %s18, 0
      %p90 = por %p88, %p89
      %p91 = scmp.ne.s32.totalorder %s80, %s83
      %p92 = scmp.eq.s32.totalorder %s23, 3
      %p93 = por %p91, %p92
      %p94 = scmp.ne.s32.totalorder %s83, %s84
      %p95 = scmp.eq.s32.totalorder %s23, 0
      %p96 = por %p94, %p95
      %p97 = scmp.ne.s32.totalorder %s83, %s84
      %p98 = scmp.eq.s32.totalorder %s24, 3
      %p99 = por %p97, %p98
      %p101 = scmp.ne.s32.totalorder %s84, %s100
      %p102 = scmp.eq.s32.totalorder %s24, 0
      %p103 = por %p101, %p102
      %s104 = ssub.s32 %s18, %s25
      %p105 = scmp.eq.s32.totalorder %s104, 0
      %s107 = sadd.s32 %s106, 1
      %s108 = scalar_select %p105, %s106, %s107
      %p111 = pneg %p105
      %p112 = scmp.eq.s32.totalorder %s18, 3
      %p113 = por %p111, %p112
      %p114 = scmp.ne.s32.totalorder %s106, %s109
      %p115 = scmp.eq.s32.totalorder %s18, 0
      %p116 = por %p114, %p115
      %p117 = scmp.ne.s32.totalorder %s106, %s109
      %p118 = scmp.eq.s32.totalorder %s23, 3
      %p119 = por %p117, %p118
      %p120 = scmp.ne.s32.totalorder %s109, %s110
      %p121 = scmp.eq.s32.totalorder %s23, 0
      %p122 = por %p120, %p121
      %p123 = scmp.ne.s32.totalorder %s109, %s110
      %p124 = scmp.eq.s32.totalorder %s24, 3
      %p125 = por %p123, %p124
      %p127 = scmp.ne.s32.totalorder %s110, %s126
      %p128 = scmp.eq.s32.totalorder %s24, 0
      %p129 = por %p127, %p128
      %p130 = scmp.le.s32.totalorder 1, %s18
      %p131 = scmp.lt.s32.totalorder %s18, 5
      %p132 = pnand %p130, %p131
      %p133 = pneg %p132
      // Predicated region
      $region9: #{latch_step.1} parent=5 // pred_check
        _
      $region10: #{latch_step.1} parent=5 // pred_check_branch
        %135 = sbr.rel (%p132) target = $region12
      $region11: #{latch_step.1} parent=5 // pred_region
        %s136 = ssub.s32 %s18, 1
      $region12: #{latch_step.1} parent=5 // pred_fallthru
        _
      %p137 = scmp.lt.s32.totalorder %s18, 4
      // Predicated region
      $region13: #{latch_step.1} parent=5 // pred_check
        %p138 = pneg %p137
      $region14: #{latch_step.1} parent=5 // pred_check_branch
        %140 = sbr.rel (%p138) target = $region16
      $region15: #{latch_step.1} parent=5 // pred_region
        // Predicated region
        $region17: #{latch_step.1} parent=15 // pred_check
          %p141 = pneg %p38
        $region18: #{latch_step.1} parent=15 // pred_check_branch
          %143 = sbr.rel (%p141) target = $region20
        $region19: #{latch_step.1} parent=15 // pred_region
          %s144 = sand.u32 %s28, 1
          %s145 = scalar_lea.sflag [#allocation3], %s144
          %s146 = sand.u32 %s28, 1
          %s147 = smul.addr %s146, 32
          %s148 = scalar_lea.vmem [#allocation2], %s147
          %s149 = smul.u32 2, %s18
          %151 = vsyncadd %s145, 0
          %s152 = smul.addr %s149, 2
          %s153 = smul.addr %s152, 8
          %s154 = scalar_lea.hbm %s0, %s153
          %s155 = sshll.u32 %s154, 4
          %s156 = int_to_ptr.hbm [resolvable:$true] %s155
          %s157 = sshll.u32 %s148, 4
          %s158 = int_to_ptr.vmem [resolvable:$true] %s157
          %163 = dma.hbm_to_vmem [thread:$0]  %s156, 512, %s158, %s145, 256, 256, 16
        $region20: #{latch_step.1} parent=15 // pred_fallthru
          _
        // Predicated region
        $region21: #{latch_step.1} parent=15 // pred_check
          %p164 = pneg %p64
        $region22: #{latch_step.1} parent=15 // pred_check_branch
          %166 = sbr.rel (%p164) target = $region24
        $region23: #{latch_step.1} parent=15 // pred_region
          %s167 = sand.u32 %s18, 1
          %s168 = scalar_lea.sflag [#allocation6], %s167
          %s169 = sand.u32 %s54, 1
          %s170 = smul.addr %s169, 32
          %s171 = scalar_lea.vmem [#allocation5], %s170
          %s172 = smul.u32 2, %s18
          %174 = vsyncadd %s168, 0
          %s175 = smul.addr %s172, 2
          %s176 = smul.addr %s175, 8
          %s177 = scalar_lea.hbm %s1, %s176
          %s178 = sshll.u32 %s177, 4
          %s179 = int_to_ptr.hbm [resolvable:$true] %s178
          %s180 = sshll.u32 %s171, 4
          %s181 = int_to_ptr.vmem [resolvable:$true] %s180
          %186 = dma.hbm_to_vmem [thread:$0]  %s179, 512, %s181, %s168, 256, 256, 16
        $region24: #{latch_step.1} parent=15 // pred_fallthru
          _
        // Predicated region
        $region25: #{latch_step.1} parent=15 // pred_check
          %p187 = pneg %p90
        $region26: #{latch_step.1} parent=15 // pred_check_branch
          %189 = sbr.rel (%p187) target = $region28
        $region27: #{latch_step.1} parent=15 // pred_region
          %s190 = sand.u32 %s18, 1
          %s191 = scalar_lea.sflag [#allocation6], %s190
          %s192 = sand.u32 %s80, 1
          %s193 = smul.addr %s192, 32
          %s194 = scalar_lea.vmem [#allocation7], %s193
          %s195 = smul.u32 2, %s18
          %197 = vsyncadd %s191, 0
          %s198 = smul.addr %s195, 2
          %s199 = smul.addr %s198, 8
          %s200 = scalar_lea.hbm %s2, %s199
          %s201 = sshll.u32 %s200, 4
          %s202 = int_to_ptr.hbm [resolvable:$true] %s201
          %s203 = sshll.u32 %s194, 4
          %s204 = int_to_ptr.vmem [resolvable:$true] %s203
          %209 = dma.hbm_to_vmem [thread:$0]  %s202, 512, %s204, %s191, 256, 256, 16
        $region28: #{latch_step.1} parent=15 // pred_fallthru
          _
      $region16: #{latch_step.1} parent=5 // pred_fallthru
        _
      %p210 = scmp.le.s32.totalorder 1, %s18
      %p211 = scmp.lt.s32.totalorder %s18, 5
      %p212 = pnand %p210, %p211
      %p213 = pneg %p212
      // Predicated region
      $region29: #{latch_step.1} parent=5 // pred_check
        _
      $region30: #{latch_step.1} parent=5 // pred_check_branch
        %215 = sbr.rel (%p212) target = $region32
      $region31: #{latch_step.1} parent=5 // pred_region
        %s216 = ssub.s32 %s18, 1
        %s217 = sand.u32 %s31, 1
        %s218 = scalar_lea.sflag [#allocation3], %s217
        %s219 = sand.u32 %s31, 1
        %s220 = smul.addr %s219, 32
        %s221 = scalar_lea.vmem [#allocation2], %s220
        // Predicated region
        $region33: #{latch_step.1} parent=31 // pred_check
          %p222 = pneg %p44
        $region34: #{latch_step.1} parent=31 // pred_check_branch
          %224 = sbr.rel (%p222) target = $region36
        $region35: #{latch_step.1} parent=31 // pred_region
          %226 = dma.done %s218, 512
        $region36: #{latch_step.1} parent=31 // pred_fallthru
          _
        %s227 = sand.u32 %s23, 1
        %s228 = scalar_lea.sflag [#allocation6], %s227
        %s229 = sand.u32 %s57, 1
        %s230 = smul.addr %s229, 32
        %s231 = scalar_lea.vmem [#allocation5], %s230
        // Predicated region
        $region37: #{latch_step.1} parent=31 // pred_check
          %p232 = pneg %p70
        $region38: #{latch_step.1} parent=31 // pred_check_branch
          %234 = sbr.rel (%p232) target = $region40
        $region39: #{latch_step.1} parent=31 // pred_region
          %236 = dma.done %s228, 512
        $region40: #{latch_step.1} parent=31 // pred_fallthru
          _
        %s237 = sand.u32 %s23, 1
        %s238 = scalar_lea.sflag [#allocation6], %s237
        %s239 = sand.u32 %s83, 1
        %s240 = smul.addr %s239, 32
        %s241 = scalar_lea.vmem [#allocation7], %s240
        // Predicated region
        $region41: #{latch_step.1} parent=31 // pred_check
          %p242 = pneg %p96
        $region42: #{latch_step.1} parent=31 // pred_check_branch
          %244 = sbr.rel (%p242) target = $region44
        $region43: #{latch_step.1} parent=31 // pred_region
          %246 = dma.done %s238, 512
        $region44: #{latch_step.1} parent=31 // pred_fallthru
          _
        %s247 = sand.u32 %s31, 1
        %s248 = scalar_lea.sflag [#allocation3], %s247
        %s249 = sand.u32 %s31, 1
        %s250 = smul.addr %s249, 32
        %s251 = scalar_lea.vmem [#allocation2], %s250
        %p252 = pneg %p44
        %p253 = pneg %p41
        %s254 = sand.u32 %s23, 1
        %s255 = scalar_lea.sflag [#allocation6], %s254
        %s256 = sand.u32 %s57, 1
        %s257 = smul.addr %s256, 32
        %s258 = scalar_lea.vmem [#allocation5], %s257
        %p259 = pneg %p70
        %p260 = pneg %p67
        %s261 = sand.u32 %s23, 1
        %s262 = scalar_lea.sflag [#allocation6], %s261
        %s263 = sand.u32 %s83, 1
        %s264 = smul.addr %s263, 32
        %s265 = scalar_lea.vmem [#allocation7], %s264
        %p266 = pneg %p96
        %p267 = pneg %p93
        %p268 = pneg %p122
        %p269 = pneg %p119
        %s270 = sand.u32 %s109, 1
        %s271 = scalar_lea.sflag [#allocation4], %s270
        %s272 = sand.u32 %s109, 1
        %s273 = smul.addr %s272, 32
        %s274 = scalar_lea.vmem [#allocation8], %s273
        %s275 = smul.u32 2, %s23
        %s276 = smul.u32 2, %s23
        %s277 = smul.u32 2, %s23
        %s278 = smul.u32 2, %s23
        %v279 = vld [vmem:[%s221] sm:$0xff]
        %v280 = vld [vmem:[%s221 + $0x8] sm:$0xff]
        %v281 = vld [vmem:[%s221 + $0x10] sm:$0xff]
        %v282 = vld [vmem:[%s221 + $0x18] sm:$0xff]
        %v283 = vmax.f32 %v279, 0.0
        %v284 = vmax.f32 %v280, 0.0
        %v285 = vmax.f32 %v281, 0.0
        %v286 = vmax.f32 %v282, 0.0
        %v287 = vmin.f32 %v283, 1.0
        %v288 = vmin.f32 %v284, 1.0
        %v289 = vmin.f32 %v285, 1.0
        %v290 = vmin.f32 %v286, 1.0
        %v291 = vadd.f32 %v287, %v288
        %292 = vadd.xlane.f32.xlu0 %v291
        %v293 = vpop.xlane.xlu0 %292
        %v294 = vadd.f32 %v289, %v290
        %295 = vadd.xlane.f32.xlu0 %v294
        %v296 = vpop.xlane.xlu0 %295
        %vm297 = vcmp.ge.f32.partialorder %v293, 192.0
        %vm298 = vcmp.ge.f32.partialorder %v296, 192.0
        %v299 = vld [vmem:[%s231] sm:$0xff]
        %v300 = vld [vmem:[%s231 + $0x8] sm:$0xff]
        %v301 = vld [vmem:[%s231 + $0x10] sm:$0xff]
        %v302 = vld [vmem:[%s231 + $0x18] sm:$0xff]
        %v303 = vld [vmem:[%s241] sm:$0xff]
        %v304 = vld [vmem:[%s241 + $0x8] sm:$0xff]
        %v305 = vld [vmem:[%s241 + $0x10] sm:$0xff]
        %v306 = vld [vmem:[%s241 + $0x18] sm:$0xff]
        %v307 = vsel %vm297, 1, 0
        %v308 = vsel %vm298, 1, 0
        %vm309 = vcmp.eq.s32.totalorder %v307, 1
        %vm310 = vcmp.eq.s32.totalorder %v308, 1
        %v311 = vsel %vm309, %v299, %v303
        %v312 = vsel %vm309, %v300, %v304
        %v313 = vsel %vm310, %v301, %v305
        %v314 = vsel %vm310, %v302, %v306
        %315 = vst [vmem:[%s274] sm:$0xff] %v311
        %316 = vst [vmem:[%s274 + $0x8] sm:$0xff] %v312
        %317 = vst [vmem:[%s274 + $0x10] sm:$0xff] %v313
        %318 = vst [vmem:[%s274 + $0x18] sm:$0xff] %v314
        %s319 = sand.u32 %s109, 1
        %s320 = scalar_lea.sflag [#allocation4], %s319
        %s321 = sand.u32 %s109, 1
        %s322 = smul.addr %s321, 32
        %s323 = scalar_lea.vmem [#allocation8], %s322
        // Predicated region
        $region45: #{latch_step.1} parent=31 // pred_check
          %p324 = pneg %p119
        $region46: #{latch_step.1} parent=31 // pred_check_branch
          %326 = sbr.rel (%p324) target = $region48
        $region47: #{latch_step.1} parent=31 // pred_region
          %s327 = smul.u32 2, %s23
          %329 = vsyncadd %s320, 0
          %s330 = smul.addr %s327, 2
          %s331 = smul.addr %s330, 8
          %s332 = scalar_lea.hbm %s3, %s331
          %s333 = sshll.u32 %s323, 4
          %s334 = int_to_ptr.vmem [resolvable:$true] %s333
          %s335 = sshll.u32 %s332, 4
          %s336 = int_to_ptr.hbm [resolvable:$true] %s335
          %341 = dma.vmem_to_hbm [thread:$0]  %s334, 512, %s336, %s320, 256, 256, 16
        $region48: #{latch_step.1} parent=31 // pred_fallthru
          _
      $region32: #{latch_step.1} parent=5 // pred_fallthru
        _
      %p342 = scmp.le.s32.totalorder 2, %s18
      // Predicated region
      $region49: #{latch_step.1} parent=5 // pred_check
        %p343 = pneg %p342
      $region50: #{latch_step.1} parent=5 // pred_check_branch
        %345 = sbr.rel (%p343) target = $region52
      $region51: #{latch_step.1} parent=5 // pred_region
        %s346 = ssub.s32 %s18, 2
        // Predicated region
        $region53: #{latch_step.1} parent=51 // pred_check
          %p347 = pneg %p125
        $region54: #{latch_step.1} parent=51 // pred_check_branch
          %349 = sbr.rel (%p347) target = $region56
        $region55: #{latch_step.1} parent=51 // pred_region
          %s350 = sand.u32 %s110, 1
          %s351 = scalar_lea.sflag [#allocation4], %s350
          %s352 = sand.u32 %s110, 1
          %s353 = smul.addr %s352, 32
          %s354 = scalar_lea.vmem [#allocation8], %s353
          %356 = dma.done %s351, 512
        $region56: #{latch_step.1} parent=51 // pred_fallthru
          _
      $region52: #{latch_step.1} parent=5 // pred_fallthru
        _
    $region6: #{latch_step.1} parent=1 // loop_footer
      %s22 = sadd.s32 1, %s18
    $region7: #{latch_step.1} parent=1 // loop_footer_branch
      %17 = sbr.rel target = $region3
    $region8: #{latch_step.1} parent=1 // loop_exit
      _
    %357 = vsyncpa [#allocation3], 1
    %s358 = scalar_lea.sflag [#allocation3], 1
    %359 = vsyncpa %s358, 1
    %360 = vsyncpa [#allocation6], 1
    %s361 = scalar_lea.sflag [#allocation6], 1
    %362 = vsyncpa %s361, 1
    %363 = vsyncpa [#allocation4], 1
    %s364 = scalar_lea.sflag [#allocation4], 1
    %365 = vsyncpa %s364, 1

</llo_original>
